<compile_context>
chip_gen: v5e
topology: v5e:2x2
jax: 0.10.0
libtpu: 0.0.40
codegen_flags: <defaults>
</compile_context>

<pallas_src>
import functools

import jax
import jax.numpy as jnp
from jax.experimental import pallas as pl
from jax.experimental.pallas import tpu as pltpu


def _fused_mlp_kernel(num_hidden, vpu_final, *refs):
    """refs = (x, w1, b1, ..., wH, bH, w_last, b_last, out)."""
    x_ref = refs[0]
    o_ref = refs[-1]
    p = refs[1:-1]

    h = x_ref[...].astype(jnp.float32)
    for i in range(num_hidden):
        w_ref, b_ref = p[2 * i], p[2 * i + 1]
        h = jnp.dot(h, w_ref[...], preferred_element_type=jnp.float32)
        h = jnp.maximum(h + b_ref[...], 0.0)  # bias + ReLU, f32 on the VPU
        # nn.Dropout(p=0.2): identity in eval mode.

    w_last_ref, b_last_ref = p[2 * num_hidden], p[2 * num_hidden + 1]
    if vpu_final:
        # Final (K -> 1) layer: broadcast-multiply + lane reduction instead of
        # a 1-column MXU matmul (avoids MXU push/pop for a single column).
        out = jnp.sum(h * w_last_ref[...], axis=-1, keepdims=True)
        out = out + b_last_ref[...]
    else:
        out = jnp.dot(h, w_last_ref[...], preferred_element_type=jnp.float32)
        out = out + b_last_ref[...]
    o_ref[...] = out.astype(o_ref.dtype)


def oil_model_forward(params, x):
    """Forward pass of OilModel as a single fused pallas_call (no grid).

    params: list of (W, b) with W stored (in_features, out_features).
    Hidden layers: relu(x @ W + b) (dropout = identity / eval mode);
    final layer:   x @ W + b.
    """
    M = x.shape[0]
    num_hidden = len(params) - 1
    w_last, b_last = params[-1]
    y_feat = w_last.shape[1]
    vpu_final = (y_feat == 1)

    flat_inputs = [x]
    for (w, b) in params[:-1]:
        flat_inputs.append(w)
        flat_inputs.append(b.reshape(1, -1))
    if vpu_final:
        # Pass the final (H, 1) weight as a (1, H) row for lane-wise multiply.
        flat_inputs.append(w_last.reshape(1, -1))
    else:
        flat_inputs.append(w_last)
    flat_inputs.append(b_last.reshape(1, -1))

    kernel = functools.partial(_fused_mlp_kernel, num_hidden, vpu_final)
    vmem_spec = pl.BlockSpec(memory_space=pltpu.MemorySpace.VMEM)
    return pl.pallas_call(
        kernel,
        out_shape=jax.ShapeDtypeStruct((M, y_feat), x.dtype),
        in_specs=[vmem_spec] * len(flat_inputs),
        out_specs=vmem_spec,
    )(*flat_inputs)


oil_model_forward_jit = jax.jit(oil_model_forward)


def init_oil_model_params(key, x_feat, y_feat, layers):
    """Deterministic init matching nn.Linear fan-in uniform bounds.

    Returns a list of (W, b) with W of shape (in, out)."""
    dims = [x_feat] + list(layers) + [y_feat]
    params = []
    for i in range(len(dims) - 1):
        fan_in, fan_out = dims[i], dims[i + 1]
        key, kw, kb = jax.random.split(key, 3)
        bound = 1.0 / jnp.sqrt(jnp.float32(fan_in))
        w = jax.random.uniform(kw, (fan_in, fan_out), jnp.float32,
                               minval=-bound, maxval=bound)
        b = jax.random.uniform(kb, (fan_out,), jnp.float32,
                               minval=-bound, maxval=bound)
        params.append((w, b))
    return params


if __name__ == "__main__":
    # Small shapes implied by the module: tabular features -> MLP -> price.
    batch = 8
    x_feat = 16
    y_feat = 1
    layers = [32, 32]

    key = jax.random.PRNGKey(0)
    key, kx = jax.random.split(key)
    x = jax.random.normal(kx, (batch, x_feat), jnp.float32)

    params = init_oil_model_params(key, x_feat, y_feat, layers)

    out = oil_model_forward_jit(params, x)
    out = jax.block_until_ready(out)
    assert out.shape == (batch, y_feat), out.shape

    # Pure-JAX reference check.
    ref = x
    for (w, b) in params[:-1]:
        ref = jnp.maximum(ref @ w + b, 0.0)
    ref = ref @ params[-1][0] + params[-1][1]
    assert jnp.allclose(out, ref, atol=1e-5, rtol=1e-5)

    print("KERNEL_OK")
</pallas_src>

<mosaic_0001>
module attributes {stable_mosaic.version = 11 : i64} {
  func.func @_fused_mlp_kernel(%arg0: memref<8x16xf32, #tpu.memory_space<vmem>>, %arg1: memref<16x32xf32, #tpu.memory_space<vmem>>, %arg2: memref<1x32xf32, #tpu.memory_space<vmem>>, %arg3: memref<32x32xf32, #tpu.memory_space<vmem>>, %arg4: memref<1x32xf32, #tpu.memory_space<vmem>>, %arg5: memref<1x32xf32, #tpu.memory_space<vmem>>, %arg6: memref<1x1xf32, #tpu.memory_space<vmem>>, %arg7: memref<8x1xf32, #tpu.memory_space<vmem>>) attributes {dimension_semantics = [], scalar_prefetch = 0 : i64, scratch_operands = 0 : i64, tpu.core_type = #tpu.core_type<tc>} {
    %c0 = arith.constant 0 : index
    %c0_0 = arith.constant 0 : index
    %0 = vector.load %arg0[%c0, %c0_0] : memref<8x16xf32, #tpu.memory_space<vmem>>, vector<8x16xf32>
    %c0_1 = arith.constant 0 : index
    %c0_2 = arith.constant 0 : index
    %1 = vector.load %arg1[%c0_1, %c0_2] : memref<16x32xf32, #tpu.memory_space<vmem>>, vector<16x32xf32>
    %cst = arith.constant dense<0.000000e+00> : vector<8x32xf32>
    %2 = tpu.matmul %0, %1, %cst {dimension_numbers = #tpu.dot_dimension_numbers<[1], [0], [0], [1], [0, 0, 1, 1], [], []>} : vector<8x16xf32>, vector<16x32xf32>, vector<8x32xf32> -> vector<8x32xf32>
    %c0_3 = arith.constant 0 : index
    %c0_4 = arith.constant 0 : index
    %3 = vector.load %arg2[%c0_3, %c0_4] : memref<1x32xf32, #tpu.memory_space<vmem>>, vector<1x32xf32>
    %4 = vector.broadcast %3 : vector<1x32xf32> to vector<8x32xf32>
    %5 = arith.addf %2, %4 : vector<8x32xf32>
    %cst_5 = arith.constant 0.000000e+00 : f32
    %6 = vector.broadcast %cst_5 : f32 to vector<8x32xf32>
    %7 = arith.maximumf %5, %6 : vector<8x32xf32>
    %c0_6 = arith.constant 0 : index
    %c0_7 = arith.constant 0 : index
    %8 = vector.load %arg3[%c0_6, %c0_7] : memref<32x32xf32, #tpu.memory_space<vmem>>, vector<32x32xf32>
    %cst_8 = arith.constant dense<0.000000e+00> : vector<8x32xf32>
    %9 = tpu.matmul %7, %8, %cst_8 {dimension_numbers = #tpu.dot_dimension_numbers<[1], [0], [0], [1], [0, 0, 1, 1], [], []>} : vector<8x32xf32>, vector<32x32xf32>, vector<8x32xf32> -> vector<8x32xf32>
    %c0_9 = arith.constant 0 : index
    %c0_10 = arith.constant 0 : index
    %10 = vector.load %arg4[%c0_9, %c0_10] : memref<1x32xf32, #tpu.memory_space<vmem>>, vector<1x32xf32>
    %11 = vector.broadcast %10 : vector<1x32xf32> to vector<8x32xf32>
    %12 = arith.addf %9, %11 : vector<8x32xf32>
    %cst_11 = arith.constant 0.000000e+00 : f32
    %13 = vector.broadcast %cst_11 : f32 to vector<8x32xf32>
    %14 = arith.maximumf %12, %13 : vector<8x32xf32>
    %c0_12 = arith.constant 0 : index
    %c0_13 = arith.constant 0 : index
    %15 = vector.load %arg5[%c0_12, %c0_13] : memref<1x32xf32, #tpu.memory_space<vmem>>, vector<1x32xf32>
    %16 = vector.broadcast %15 : vector<1x32xf32> to vector<8x32xf32>
    %17 = arith.mulf %14, %16 : vector<8x32xf32>
    %cst_14 = arith.constant dense<0.000000e+00> : vector<8xf32>
    %18 = vector.multi_reduction <add>, %17, %cst_14 [1] : vector<8x32xf32> to vector<8xf32>
    %19 = vector.shape_cast %18 : vector<8xf32> to vector<8x1xf32>
    %c0_15 = arith.constant 0 : index
    %c0_16 = arith.constant 0 : index
    %20 = vector.load %arg6[%c0_15, %c0_16] : memref<1x1xf32, #tpu.memory_space<vmem>>, vector<1x1xf32>
    %21 = vector.broadcast %20 : vector<1x1xf32> to vector<8x1xf32>
    %22 = arith.addf %19, %21 : vector<8x1xf32>
    %c0_17 = arith.constant 0 : index
    %c0_18 = arith.constant 0 : index
    %23 = vector.load %arg7[%c0_17, %c0_18] : memref<8x1xf32, #tpu.memory_space<vmem>>, vector<8x1xf32>
    tpu.vector_store %arg7[%c0_17, %c0_18], %22 {strides = array<i32>} : memref<8x1xf32, #tpu.memory_space<vmem>>, vector<8x1xf32>,
    return
  }
}

</mosaic_0001>

<llo_original>
// kernel: oil_model_forward.1
$region0: #{oil_model_forward.1}
  #allocation0 [shape = 'u32[]', space=smem, size = 0x4, offset = 0x4, fixed_abs, tag = 'smem constant byte address 0x4 - core index']
  #allocation1 [shape = 'u32[72,128]{1,0:T(1,128)}', space=vmem, size = 0x9000, scoped, tag = 'internal scratch']
  #allocation2 [shape = 'f32[1,1]{1,0:T(1,128)S(1)}', space=vmem, size = 0x200, scoped, tag = 'scoped memory for oil_model_forward.1']
  %s0 = inlined_call_operand.vmem [shape: f32[8,16], index: 0, kind: input, shape index: {}]
  %s1 = inlined_call_operand.hbm [shape: f32[16,32], index: 1, kind: input, shape index: {}]
  %s2 = inlined_call_operand.vmem [shape: f32[1,32], index: 2, kind: input, shape index: {}]
  %s3 = inlined_call_operand.hbm [shape: f32[32,32], index: 3, kind: input, shape index: {}]
  %s4 = inlined_call_operand.vmem [shape: f32[1,32], index: 4, kind: input, shape index: {}]
  %s5 = inlined_call_operand.hbm [shape: f32[1,32], index: 5, kind: input, shape index: {}]
  %s6 = inlined_call_operand.<no memory space> [shape: f32[1,1], index: 6, kind: input, shape index: {}]
  %s7 = inlined_call_operand.vmem [shape: f32[8,1], index: 7, kind: output, shape index: {}]
  %s8 = sld [smem:[#allocation0]]
  $region50: #{oil_model_forward.1} parent=0
    _
  %s10 = ssub.s32 1, %s8
  %s11 = scalar_select 0, %s10, %s8
  %v12 = vstv %s6
  %13 = vst [vmem:[#allocation2] sm:$0x1] %v12
  $region1: #{oil_model_forward.1} parent=0
    #allocation3 [shape = 'u8[8192]{0}', space=vmem, size = 0x2000, scoped, tag = 'input window, operand 1, single buffered']
    #allocation4 [shape = 's32[1]{0}', space=sflag, size = 0x4, scoped, tag = 'scoped memory for oil_model_forward.1']
    #allocation5 [shape = 'u8[16384]{0}', space=vmem, size = 0x4000, scoped, tag = 'input window, operand 3, single buffered']
    #allocation6 [shape = 's32[1]{0}', space=sflag, size = 0x4, scoped, tag = 'scoped memory for oil_model_forward.1']
    #allocation7 [shape = 'u8[512]{0}', space=vmem, size = 0x400, scoped, tag = 'input window, operand 5, single buffered']
    %14 = vsyncpa [#allocation4], 0
    %15 = vsyncpa [#allocation6], 0
    // Predicated region
    $region2: #{oil_model_forward.1} parent=1 // pred_check
      _
    $region3: #{oil_model_forward.1} parent=1 // pred_check_branch
      %17 = sbr.rel (0) target = $region5
    $region4: #{oil_model_forward.1} parent=1 // pred_region
      _
    $region5: #{oil_model_forward.1} parent=1 // pred_fallthru
      _
    // Predicated region
    $region6: #{oil_model_forward.1} parent=1 // pred_check
      _
    $region7: #{oil_model_forward.1} parent=1 // pred_check_branch
      %19 = sbr.rel (0) target = $region9
    $region8: #{oil_model_forward.1} parent=1 // pred_region
      %21 = vsyncadd [#allocation4], 0
      %s22 = sshll.u32 %s1, 4
      %s23 = int_to_ptr.hbm [resolvable:$true] %s22
      %s24 = sshll.u32 [#allocation3], 4
      %s25 = int_to_ptr.vmem [resolvable:$true] %s24
      %30 = dma.hbm_to_vmem [thread:$0]  %s23, 256, %s25, [#allocation4], 128, 128, 8
    $region9: #{oil_model_forward.1} parent=1 // pred_fallthru
      _
    // Predicated region
    $region10: #{oil_model_forward.1} parent=1 // pred_check
      _
    $region11: #{oil_model_forward.1} parent=1 // pred_check_branch
      %32 = sbr.rel (0) target = $region13
    $region12: #{oil_model_forward.1} parent=1 // pred_region
      _
    $region13: #{oil_model_forward.1} parent=1 // pred_fallthru
      _
    // Predicated region
    $region14: #{oil_model_forward.1} parent=1 // pred_check
      _
    $region15: #{oil_model_forward.1} parent=1 // pred_check_branch
      %34 = sbr.rel (0) target = $region17
    $region16: #{oil_model_forward.1} parent=1 // pred_region
      %36 = vsyncadd [#allocation6], 0
      %s37 = sshll.u32 %s3, 4
      %s38 = int_to_ptr.hbm [resolvable:$true] %s37
      %s39 = sshll.u32 [#allocation5], 4
      %s40 = int_to_ptr.vmem [resolvable:$true] %s39
      %45 = dma.hbm_to_vmem [thread:$0]  %s38, 512, %s40, [#allocation6], 128, 128, 8
    $region17: #{oil_model_forward.1} parent=1 // pred_fallthru
      _
    // Predicated region
    $region18: #{oil_model_forward.1} parent=1 // pred_check
      _
    $region19: #{oil_model_forward.1} parent=1 // pred_check_branch
      %47 = sbr.rel (0) target = $region21
    $region20: #{oil_model_forward.1} parent=1 // pred_region
      _
    $region21: #{oil_model_forward.1} parent=1 // pred_fallthru
      _
    // Predicated region
    $region22: #{oil_model_forward.1} parent=1 // pred_check
      _
    $region23: #{oil_model_forward.1} parent=1 // pred_check_branch
      %49 = sbr.rel (0) target = $region25
    $region24: #{oil_model_forward.1} parent=1 // pred_region
      %51 = vsyncadd [#allocation6], 0
      %s53 = sshll.u32 %s5, 4
      %s54 = int_to_ptr.hbm [resolvable:$true] %s53
      %s55 = sshll.u32 [#allocation7], 4
      %s56 = int_to_ptr.vmem [resolvable:$true] %s55
      %58 = dma.hbm_to_vmem [thread:$0]  %s54, 16, %s56, [#allocation6]
    $region25: #{oil_model_forward.1} parent=1 // pred_fallthru
      _
    // Predicated region
    $region26: #{oil_model_forward.1} parent=1 // pred_check
      _
    $region27: #{oil_model_forward.1} parent=1 // pred_check_branch
      %60 = sbr.rel (0) target = $region29
    $region28: #{oil_model_forward.1} parent=1 // pred_region
      _
    $region29: #{oil_model_forward.1} parent=1 // pred_fallthru
      _
    // Predicated region
    $region30: #{oil_model_forward.1} parent=1 // pred_check
      _
    $region31: #{oil_model_forward.1} parent=1 // pred_check_branch
      %62 = sbr.rel (0) target = $region33
    $region32: #{oil_model_forward.1} parent=1 // pred_region
      %64 = dma.done [#allocation4], 256
    $region33: #{oil_model_forward.1} parent=1 // pred_fallthru
      _
    // Predicated region
    $region34: #{oil_model_forward.1} parent=1 // pred_check
      _
    $region35: #{oil_model_forward.1} parent=1 // pred_check_branch
      %66 = sbr.rel (0) target = $region37
    $region36: #{oil_model_forward.1} parent=1 // pred_region
      %68 = dma.done [#allocation6], 512
    $region37: #{oil_model_forward.1} parent=1 // pred_fallthru
      _
    // Predicated region
    $region38: #{oil_model_forward.1} parent=1 // pred_check
      _
    $region39: #{oil_model_forward.1} parent=1 // pred_check_branch
      %70 = sbr.rel (0) target = $region41
    $region40: #{oil_model_forward.1} parent=1 // pred_region
      %72 = dma.done [#allocation6], 16
    $region41: #{oil_model_forward.1} parent=1 // pred_fallthru
      _
    %v73 = vld [vmem:[%s0] sm:$0xff]
    %v74 = vld [vmem:[#allocation3] sm:$0xff]
    %v75 = vld [vmem:[#allocation3 + $0x8] sm:$0xff]
    %v76 = vld [vmem:[%s2] sm:$0x1]
    %v78 = vperm.slane %v76, 0
    %vm80 = vcmask 130048
    %v82 = vsel %vm80, %v73, 0
    %84 = vmatpush.msra.mxu0 0.0
    %85 = vmatpush.msra.mxu0 0.0
    %86 = vmatpush.msra.mxu0 0.0
    %87 = vmatpush.msra.mxu0 0.0
    %88 = vmatpush.msra.mxu0 0.0
    %89 = vmatpush.msra.mxu0 0.0
    %90 = vmatpush.msra.mxu0 0.0
    %91 = vmatpush.msra.mxu0 0.0
    %92 = vmatpush.msra.mxu0 0.0
    %93 = vmatpush.msra.mxu0 0.0
    %94 = vmatpush.msra.mxu0 0.0
    %95 = vmatpush.msra.mxu0 0.0
    %96 = vmatpush.msra.mxu0 0.0
    %97 = vmatpush.msra.mxu0 0.0
    %98 = vmatpush.msra.mxu0 %v75
    %99 = vmatpush.msra.mxu0 %v74
    %100 = vmatmul.f32.gmra.mxu0 %v82
    %v101 = vpop.f32.mrf.mxu0
    %v102 = vadd.f32 %v78, %v101
    %103 = vdwg.mxu0
    %v104 = vmax.f32 %v102, 0.0
    %v105 = vld [vmem:[#allocation5] sm:$0xff]
    %v106 = vld [vmem:[#allocation5 + $0x8] sm:$0xff]
    %v107 = vld [vmem:[#allocation5 + $0x10] sm:$0xff]
    %v108 = vld [vmem:[#allocation5 + $0x18] sm:$0xff]
    %v109 = vld [vmem:[%s4] sm:$0x1]
    %v111 = vperm.slane %v109, 0
    %vm113 = vcmask 261120
    %v115 = vsel %vm113, %v104, 0
    %117 = vmatpush.msra.mxu0 0.0
    %118 = vmatpush.msra.mxu0 0.0
    %119 = vmatpush.msra.mxu0 0.0
    %120 = vmatpush.msra.mxu0 0.0
    %121 = vmatpush.msra.mxu0 0.0
    %122 = vmatpush.msra.mxu0 0.0
    %123 = vmatpush.msra.mxu0 0.0
    %124 = vmatpush.msra.mxu0 0.0
    %125 = vmatpush.msra.mxu0 0.0
    %126 = vmatpush.msra.mxu0 0.0
    %127 = vmatpush.msra.mxu0 0.0
    %128 = vmatpush.msra.mxu0 0.0
    %129 = vmatpush.msra.mxu0 %v108
    %130 = vmatpush.msra.mxu0 %v107
    %131 = vmatpush.msra.mxu0 %v106
    %132 = vmatpush.msra.mxu0 %v105
    %133 = vmatmul.f32.gmra.mxu0 %v115
    %v134 = vpop.f32.mrf.mxu0
    %v135 = vadd.f32 %v111, %v134
    %136 = vdwg.mxu0
    %v137 = vmax.f32 %v135, 0.0
    %v138 = vld [vmem:[#allocation7] sm:$0x1]
    %v140 = vperm.slane %v138, 0
    %v142 = vmul.f32 %v137, %v140
    %v143 = vsel %vm113, %v142, 0.0
    %144 = vadd.xlane.f32.xlu0 %v143
    %v145 = vpop.xlane.xlu0 %144
    %v146 = vld [vmem:[#allocation2] sm:$0x1]
    %v148 = vperm.slane %v146, 0
    %v150 = vadd.f32 %v145, %v148
    %vm151 = vcmask 7168
    %152 = vst.msk [vmem:[%s7] sm:$0xff] %vm151, %v150
    // Predicated region
    $region42: #{oil_model_forward.1} parent=1 // pred_check
      _
    $region43: #{oil_model_forward.1} parent=1 // pred_check_branch
      %154 = sbr.rel (0) target = $region45
    $region44: #{oil_model_forward.1} parent=1 // pred_region
      _
    $region45: #{oil_model_forward.1} parent=1 // pred_fallthru
      _
    // Predicated region
    $region46: #{oil_model_forward.1} parent=1 // pred_check
      _
    $region47: #{oil_model_forward.1} parent=1 // pred_check_branch
      %156 = sbr.rel (0) target = $region49
    $region48: #{oil_model_forward.1} parent=1 // pred_region
      _
    $region49: #{oil_model_forward.1} parent=1 // pred_fallthru
      _
    %157 = vsyncpa [#allocation4], 1
    %158 = vsyncpa [#allocation6], 1

</llo_original>
